<compile_context>
chip_gen: v5e
topology: v5e:2x2
jax: 0.10.0
libtpu: 0.0.40
codegen_flags: <defaults>
</compile_context>

<pallas_src>
import math

import jax
import jax.numpy as jnp
from jax.experimental import pallas as pl
from jax.experimental.pallas import tpu as pltpu

_SMALL_TOTAL = 65536            # below this, XLA broadcast beats a kernel launch
_MAX_LANE_W = 16384             # cap on slab row width (64 KiB of f32 per row)
_BLOCK_BYTES = 4 * 1024 * 1024  # ~4 MiB output blocks (x2 double-buffered)


def _cdiv(a, b):
    return -(-a // b)


def _round_up(a, b):
    return _cdiv(a, b) * b


def _broadcast_store_kernel(pat_ref, o_ref):
    # pat_ref: (1, lane_w) one-hot pattern row, resident in VMEM across all
    # grid steps (constant index_map).  Pure broadcasted store — no iota,
    # modulo or compare per element, so the steady state is store-slot /
    # HBM-write bound on every TPU generation.
    o_ref[...] = jnp.broadcast_to(pat_ref[...], o_ref.shape)


def fixed_class_predictor(inputs, predicted_class: int, num_classes: int,
                          *, force_pallas: bool = False):
    """JAX/Pallas equivalent of FixedClassPredictor.forward.

    `inputs` is either an int (the batch size) or a dict containing
    'curr_node_id' whose leading dimension is the batch size.
    """
    assert 0 <= predicted_class < num_classes, (
        f"predicted_class should be in [0, {num_classes})."
    )
    batch_size = inputs if isinstance(inputs, int) else inputs["curr_node_id"].shape[0]
    total = batch_size * num_classes

    if total == 0:
        return jnp.zeros((batch_size, num_classes), jnp.float32)

    # Tiny outputs: skip Pallas entirely (launch overhead >> data movement).
    if (not force_pallas) and total < _SMALL_TOTAL:
        row = jnp.zeros((num_classes,), jnp.float32).at[predicted_class].set(1.0)
        return jnp.broadcast_to(row, (batch_size, num_classes))

    # --- lane-dense slab geometry -------------------------------------------
    lane_w = (num_classes * 128) // math.gcd(num_classes, 128)  # lcm(nc, 128)
    if lane_w > _MAX_LANE_W:
        # num_classes > 128 here, so rows of width num_classes are already
        # reasonably lane-dense; use the output row width directly.
        lane_w = num_classes
    batch_per_row = lane_w // num_classes
    rows_needed = _cdiv(batch_size, batch_per_row)

    row_bytes = lane_w * 4
    tile_rows_cap = max(8, (_BLOCK_BYTES // row_bytes) // 8 * 8)
    if rows_needed <= tile_rows_cap:
        tile_rows, num_tiles = rows_needed, 1            # single block == array
    else:
        nt = _cdiv(rows_needed, tile_rows_cap)
        tile_rows = _round_up(_cdiv(rows_needed, nt), 8)  # even split, 8-aligned
        num_tiles = _cdiv(rows_needed, tile_rows)         # last block clipped

    # One-hot pattern row, precomputed once in XLA (lane_w % num_classes == 0,
    # so (row*lane_w + lane) % num_classes == lane % num_classes).
    lane = jnp.arange(lane_w, dtype=jnp.int32)
    pattern = (lane % num_classes == predicted_class).astype(jnp.float32)
    pattern = pattern.reshape(1, lane_w)

    slab = pl.pallas_call(
        _broadcast_store_kernel,
        out_shape=jax.ShapeDtypeStruct((rows_needed, lane_w), jnp.float32),
        grid=(num_tiles,),
        in_specs=[pl.BlockSpec((1, lane_w), lambda i: (0, 0))],      # resident
        out_specs=pl.BlockSpec((tile_rows, lane_w), lambda i: (i, 0)),
        compiler_params=pltpu.CompilerParams(
            dimension_semantics=("parallel",)
        ),
    )(pattern)

    if rows_needed * lane_w == total:
        # batch divisible by batch_per_row -> pure (free) reshape.
        return slab.reshape(batch_size, num_classes)
    # Ragged tail: one slice dropping < lane_w trailing pad elements.
    return slab.reshape(-1)[:total].reshape(batch_size, num_classes)


def _reference(batch_size, predicted_class, num_classes):
    return (
        jnp.zeros((batch_size, num_classes), jnp.float32)
        .at[:, predicted_class]
        .set(1.0)
    )


if __name__ == "__main__":
    key = jax.random.PRNGKey(0)

    # --- Typical module usage (dict input, small shapes); force Pallas path ---
    batch_size, num_classes, predicted_class = 8, 10, 3
    inputs = {
        "curr_node_id": jax.random.randint(
            key, (batch_size,), 0, 100, dtype=jnp.int32
        )
    }
    probs = fixed_class_predictor(inputs, predicted_class, num_classes,
                                  force_pallas=True)
    probs = jax.block_until_ready(probs)
    assert probs.shape == (batch_size, num_classes)
    assert probs.dtype == jnp.float32
    assert bool(jnp.all(probs == _reference(batch_size, predicted_class, num_classes)))

    # --- Same small case through the default XLA short-circuit path ---
    probs_sc = jax.block_until_ready(
        fixed_class_predictor(inputs, predicted_class, num_classes)
    )
    assert bool(jnp.all(probs_sc == _reference(batch_size, predicted_class, num_classes)))

    # --- Single-tile slab, exact (free-bitcast) reshape ---
    p2 = jax.block_until_ready(fixed_class_predictor(2048, 17, 130))
    assert p2.shape == (2048, 130)
    assert bool(jnp.all(p2 == _reference(2048, 17, 130)))

    # --- Multi-tile slab with a clipped last block and ragged tail reshape ---
    p3 = jax.block_until_ready(fixed_class_predictor(40000, 5, 33))
    assert p3.shape == (40000, 33)
    assert bool(jnp.all(p3 == _reference(40000, 5, 33)))

    # --- Fallback path (lcm(num_classes,128) too wide): lane_w == num_classes ---
    p4 = jax.block_until_ready(fixed_class_predictor(512, 100, 129))
    assert p4.shape == (512, 129)
    assert bool(jnp.all(p4 == _reference(512, 100, 129)))

    print("KERNEL_OK")
</pallas_src>

<mosaic_0001>
module attributes {stable_mosaic.version = 11 : i64} {
  func.func @_broadcast_store_kernel(%arg0: i32, %arg1: memref<1x640xf32, #tpu.memory_space<vmem>>, %arg2: memref<1x640xf32, #tpu.memory_space<vmem>>) attributes {dimension_semantics = [#tpu.dimension_semantics<parallel>], iteration_bounds = array<i64: 1>, scalar_prefetch = 0 : i64, scratch_operands = 0 : i64, tpu.core_type = #tpu.core_type<tc>, window_params = [{pipeline_mode = #tpu.pipeline_mode<synchronous>, transform_indices = @transform_0, window_bounds = array<i64: 1, 640>}, {transform_indices = @transform_1, window_bounds = array<i64: 1, 640>}]} {
    %c0 = arith.constant 0 : index
    %c0_0 = arith.constant 0 : index
    %0 = vector.load %arg1[%c0, %c0_0] : memref<1x640xf32, #tpu.memory_space<vmem>>, vector<1x640xf32>
    %c0_1 = arith.constant 0 : index
    %c0_2 = arith.constant 0 : index
    %1 = vector.load %arg2[%c0_1, %c0_2] : memref<1x640xf32, #tpu.memory_space<vmem>>, vector<1x640xf32>
    tpu.vector_store %arg2[%c0_1, %c0_2], %0 {strides = array<i32>} : memref<1x640xf32, #tpu.memory_space<vmem>>, vector<1x640xf32>,
    return
  }
  func.func @transform_0(%arg0: i32) -> (i32, i32) {
    %c0_i32 = arith.constant 0 : i32
    %c0_i32_0 = arith.constant 0 : i32
    %c0_i32_1 = arith.constant 0 : i32
    return %c0_i32, %c0_i32_0 : i32, i32
  }
  func.func @transform_1(%arg0: i32) -> (i32, i32) {
    %c0_i32 = arith.constant 0 : i32
    %c0_i32_0 = arith.constant 0 : i32
    return %arg0, %c0_i32 : i32, i32
  }
}

</mosaic_0001>

<llo_original>
// kernel: tpu_custom_call.1
$region0: #{tpu_custom_call.1}
  #allocation0 [shape = 'u32[]', space=smem, size = 0x4, offset = 0x4, fixed_abs, tag = 'smem constant byte address 0x4 - core index']
  #allocation1 [shape = 'u32[72,128]{1,0:T(1,128)}', space=vmem, size = 0x9000, scoped, tag = 'internal scratch']
  %s0 = inlined_call_operand.hbm [shape: f32[1,640], index: 0, kind: input, shape index: {}]
  %s1 = inlined_call_operand.hbm [shape: f32[1,640], index: 1, kind: output, shape index: {}]
  %s2 = sld [smem:[#allocation0]]
  $region18: #{tpu_custom_call.1} parent=0
    _
  %s4 = ssub.s32 1, %s2
  %s5 = scalar_select 0, %s4, %s2
  $region1: #{tpu_custom_call.1} parent=0
    #allocation2 [shape = 'u8[2560]{0}', space=vmem, size = 0xc00, scoped, tag = 'input window, operand 0, single buffered']
    #allocation3 [shape = 's32[1]{0}', space=sflag, size = 0x4, scoped, tag = 'scoped memory for tpu_custom_call.1']
    #allocation4 [shape = 's32[1]{0}', space=sflag, size = 0x4, scoped, tag = 'scoped memory for tpu_custom_call.1']
    #allocation5 [shape = 'u8[2560]{0}', space=vmem, size = 0xc00, scoped, tag = 'output window, operand 0, single buffered']
    %6 = vsyncpa [#allocation3], 0
    %7 = vsyncpa [#allocation4], 0
    // Predicated region
    $region2: #{tpu_custom_call.1} parent=1 // pred_check
      _
    $region3: #{tpu_custom_call.1} parent=1 // pred_check_branch
      %9 = sbr.rel (0) target = $region5
    $region4: #{tpu_custom_call.1} parent=1 // pred_region
      %11 = vsyncadd [#allocation3], 0
      %s13 = sshll.u32 %s0, 4
      %s14 = int_to_ptr.hbm [resolvable:$true] %s13
      %s15 = sshll.u32 [#allocation2], 4
      %s16 = int_to_ptr.vmem [resolvable:$true] %s15
      %18 = dma.hbm_to_vmem [thread:$0]  %s14, 80, %s16, [#allocation3]
    $region5: #{tpu_custom_call.1} parent=1 // pred_fallthru
      _
    // Predicated region
    $region6: #{tpu_custom_call.1} parent=1 // pred_check
      _
    $region7: #{tpu_custom_call.1} parent=1 // pred_check_branch
      %20 = sbr.rel (0) target = $region9
    $region8: #{tpu_custom_call.1} parent=1 // pred_region
      %22 = dma.done [#allocation3], 80
    $region9: #{tpu_custom_call.1} parent=1 // pred_fallthru
      _
    %v23 = vld [vmem:[#allocation2] sm:$0x1f]
    %v24 = vlaneseq
    %vm25 = vcmp.ge.s32.totalorder %v24, 0
    %vm26 = vcmp.lt.s32.totalorder %v24, 640
    %vm27 = vmand %vm25, %vm26
    %28 = vst.msk [vmem:[#allocation5] sm:$0x1f] %vm27, %v23
    // Predicated region
    $region10: #{tpu_custom_call.1} parent=1 // pred_check
      _
    $region11: #{tpu_custom_call.1} parent=1 // pred_check_branch
      %30 = sbr.rel (0) target = $region13
    $region12: #{tpu_custom_call.1} parent=1 // pred_region
      %32 = vsyncadd [#allocation4], 0
      %s34 = sshll.u32 [#allocation5], 4
      %s35 = int_to_ptr.vmem [resolvable:$true] %s34
      %s36 = sshll.u32 %s1, 4
      %s37 = int_to_ptr.hbm [resolvable:$true] %s36
      %39 = dma.vmem_to_hbm [thread:$0]  %s35, 80, %s37, [#allocation4]
    $region13: #{tpu_custom_call.1} parent=1 // pred_fallthru
      _
    // Predicated region
    $region14: #{tpu_custom_call.1} parent=1 // pred_check
      _
    $region15: #{tpu_custom_call.1} parent=1 // pred_check_branch
      %41 = sbr.rel (0) target = $region17
    $region16: #{tpu_custom_call.1} parent=1 // pred_region
      %43 = dma.done [#allocation4], 80
    $region17: #{tpu_custom_call.1} parent=1 // pred_fallthru
      _
    %44 = vsyncpa [#allocation3], 1
    %45 = vsyncpa [#allocation4], 1

</llo_original>
